<compile_context>
chip_gen: v6e
topology: v6e:2x2x1
jax: 0.10.0
libtpu: 0.0.40
codegen_flags: <defaults>
</compile_context>

<pallas_src>
import functools

import jax
import jax.numpy as jnp
import numpy as np
from jax import lax
from jax.experimental import pallas as pl
from jax.experimental.pallas import tpu as pltpu


def rnn_kernel(x2d_ref, wih_ref, whht_ref, b_ref, out_ref, *, seq_len, batch):
    """Whole-sequence RNN in one invocation, recurrence kept in vregs.

    x2d_ref  : (T*B, I)  flattened inputs (VMEM)
    wih_ref  : (H, I)    W_ih in PyTorch layout (VMEM)
    whht_ref : (H, H)    W_hh^T (pre-transposed in the wrapper; standard (K,N) RHS)
    b_ref    : (1, H)    b_ih + b_hh
    out_ref  : (T*B, H)  output block (VMEM) -> single store, single HBM writeback
    """
    # Hoisted input projection (off the serial chain): one MXU call for all T
    # steps, kept as a value in registers, bias included.
    pre_all = (
        lax.dot_general(
            x2d_ref[...], wih_ref[...],
            dimension_numbers=(((1,), (1,)), ((), ())),   # x @ W_ih^T
            preferred_element_type=jnp.float32,
        )
        + b_ref[...]
    )

    # Read W_hh^T exactly once; the unrolled loop closes over the value.
    whh_t = whht_ref[...].astype(jnp.float32)
    hidden = whh_t.shape[1]

    h = jnp.zeros((batch, hidden), jnp.float32)  # zero initial hidden state
    outs = []
    # Serial recurrence, fully unrolled with static slices (T is compile-time).
    # TODO(synk): on v5e/v6e, benchmark an MXU-free VPU formulation of
    # h @ whh_t (sum of scaled rows) against this MXU call to dodge the MRF
    # push->pop latency on the serial chain; keep MXU on v7x (MRB path).
    for t in range(seq_len):
        pre = pre_all[t * batch:(t + 1) * batch, :]            # static slice, no VMEM trip
        h = jnp.tanh(pre + jnp.dot(h, whh_t, preferred_element_type=jnp.float32))
        outs.append(h)

    # One contiguous store of the whole (T*B, H) result.
    out_ref[...] = jnp.concatenate(outs, axis=0).astype(out_ref.dtype)


def rnn_forward(x, w_ih, w_hh, b_ih, b_hh):
    """Single-layer RNN forward, zero initial hidden state.

    x    : (T, B, I) float32
    w_ih : (H, I), w_hh : (H, H), b_ih : (H,), b_hh : (H,)
    returns (T*B, H)
    """
    T, B, I = x.shape
    H = w_ih.shape[0]
    x2d = x.reshape(T * B, I)
    b = (b_ih + b_hh).reshape(1, H).astype(jnp.float32)
    w_hh_t = jnp.transpose(w_hh)  # one-time (H,H) transpose, off the critical path

    kernel = functools.partial(rnn_kernel, seq_len=T, batch=B)

    # TODO(synk): at realistic sizes (H in the hundreds+), tile H/B to (8,128)
    # multiples, cast MXU operands to bf16 on v6e/v7x (activations/tanh stay
    # f32 on v5e), re-derive the whole-sequence-resident VMEM budget against
    # v7x's 64 MiB (set vmem_limit_bytes explicitly), and parallelize only
    # over batch for v7x's two TensorCores — never over the time axis.
    out = pl.pallas_call(
        kernel,
        out_shape=jax.ShapeDtypeStruct((T * B, H), x.dtype),
        in_specs=[
            pl.BlockSpec(memory_space=pltpu.MemorySpace.VMEM),  # x2d
            pl.BlockSpec(memory_space=pltpu.MemorySpace.VMEM),  # W_ih
            pl.BlockSpec(memory_space=pltpu.MemorySpace.VMEM),  # W_hh^T
            pl.BlockSpec(memory_space=pltpu.MemorySpace.VMEM),  # bias
        ],
        out_specs=pl.BlockSpec(memory_space=pltpu.MemorySpace.VMEM),
    )(x2d, w_ih, w_hh_t, b)
    return out


def rnn_reference(x, w_ih, w_hh, b_ih, b_hh):
    """Pure-JAX reference matching torch.nn.RNN (tanh) single-layer semantics."""
    T, B, I = x.shape
    H = w_ih.shape[0]
    h0 = jnp.zeros((B, H), jnp.float32)

    def step(h, x_t):
        h_new = jnp.tanh(x_t @ w_ih.T + h @ w_hh.T + b_ih + b_hh)
        return h_new, h_new

    _, outs = lax.scan(step, h0, x)
    return outs.reshape(-1, H)


if __name__ == "__main__":
    # Module hyperparameters (from the PyTorch script).
    batch_size = 1
    hidden_size = 4
    input_size = 4
    num_layers = 1  # single layer implemented (matches the spec)
    seq_len = 8

    key = jax.random.PRNGKey(0)
    k_x, k_wih, k_whh, k_bih, k_bhh = jax.random.split(key, 5)

    # PyTorch RNN parameter init: U(-1/sqrt(H), 1/sqrt(H))
    bound = 1.0 / np.sqrt(hidden_size)
    w_ih = jax.random.uniform(k_wih, (hidden_size, input_size), jnp.float32, -bound, bound)
    w_hh = jax.random.uniform(k_whh, (hidden_size, hidden_size), jnp.float32, -bound, bound)
    b_ih = jax.random.uniform(k_bih, (hidden_size,), jnp.float32, -bound, bound)
    b_hh = jax.random.uniform(k_bhh, (hidden_size,), jnp.float32, -bound, bound)

    # input: (seq_len, batch, input_size) — PyTorch batch_first=False layout.
    x = jax.random.normal(k_x, (seq_len, batch_size, input_size), jnp.float32)

    out = jax.jit(rnn_forward)(x, w_ih, w_hh, b_ih, b_hh)
    jax.block_until_ready(out)

    ref = rnn_reference(x, w_ih, w_hh, b_ih, b_hh)
    np.testing.assert_allclose(np.asarray(out), np.asarray(ref), rtol=1e-5, atol=1e-5)
    assert out.shape == (seq_len * batch_size, hidden_size)

    print("KERNEL_OK")
</pallas_src>

<mosaic_0001>
module attributes {stable_mosaic.version = 11 : i64} {
  func.func @rnn_kernel(%arg0: memref<8x4xf32, #tpu.memory_space<vmem>>, %arg1: memref<4x4xf32, #tpu.memory_space<vmem>>, %arg2: memref<4x4xf32, #tpu.memory_space<vmem>>, %arg3: memref<1x4xf32, #tpu.memory_space<vmem>>, %arg4: memref<8x4xf32, #tpu.memory_space<vmem>>) attributes {dimension_semantics = [], scalar_prefetch = 0 : i64, scratch_operands = 0 : i64, tpu.core_type = #tpu.core_type<tc>} {
    %c0 = arith.constant 0 : index
    %c0_0 = arith.constant 0 : index
    %0 = vector.load %arg0[%c0, %c0_0] : memref<8x4xf32, #tpu.memory_space<vmem>>, vector<8x4xf32>
    %c0_1 = arith.constant 0 : index
    %c0_2 = arith.constant 0 : index
    %1 = vector.load %arg1[%c0_1, %c0_2] : memref<4x4xf32, #tpu.memory_space<vmem>>, vector<4x4xf32>
    %cst = arith.constant dense<0.000000e+00> : vector<8x4xf32>
    %2 = tpu.matmul %0, %1, %cst {dimension_numbers = #tpu.dot_dimension_numbers<[1], [1], [0], [0], [0, 0, 1, 0], [], []>} : vector<8x4xf32>, vector<4x4xf32>, vector<8x4xf32> -> vector<8x4xf32>
    %c0_3 = arith.constant 0 : index
    %c0_4 = arith.constant 0 : index
    %3 = vector.load %arg3[%c0_3, %c0_4] : memref<1x4xf32, #tpu.memory_space<vmem>>, vector<1x4xf32>
    %4 = vector.broadcast %3 : vector<1x4xf32> to vector<8x4xf32>
    %5 = arith.addf %2, %4 : vector<8x4xf32>
    %c0_5 = arith.constant 0 : index
    %c0_6 = arith.constant 0 : index
    %6 = vector.load %arg2[%c0_5, %c0_6] : memref<4x4xf32, #tpu.memory_space<vmem>>, vector<4x4xf32>
    %cst_7 = arith.constant 0.000000e+00 : f32
    %7 = vector.broadcast %cst_7 : f32 to vector<1x4xf32>
    %8 = vector.extract_strided_slice %5 {offsets = [0, 0], sizes = [1, 4], strides = [1, 1]} : vector<8x4xf32> to vector<1x4xf32>
    %cst_8 = arith.constant dense<0.000000e+00> : vector<1x4xf32>
    %9 = tpu.matmul %7, %6, %cst_8 {dimension_numbers = #tpu.dot_dimension_numbers<[1], [0], [0], [1], [0, 0, 1, 1], [], []>} : vector<1x4xf32>, vector<4x4xf32>, vector<1x4xf32> -> vector<1x4xf32>
    %10 = arith.addf %8, %9 : vector<1x4xf32>
    %11 = math.tanh %10 : vector<1x4xf32>
    %12 = vector.extract_strided_slice %5 {offsets = [1, 0], sizes = [1, 4], strides = [1, 1]} : vector<8x4xf32> to vector<1x4xf32>
    %cst_9 = arith.constant dense<0.000000e+00> : vector<1x4xf32>
    %13 = tpu.matmul %11, %6, %cst_9 {dimension_numbers = #tpu.dot_dimension_numbers<[1], [0], [0], [1], [0, 0, 1, 1], [], []>} : vector<1x4xf32>, vector<4x4xf32>, vector<1x4xf32> -> vector<1x4xf32>
    %14 = arith.addf %12, %13 : vector<1x4xf32>
    %15 = math.tanh %14 : vector<1x4xf32>
    %16 = vector.extract_strided_slice %5 {offsets = [2, 0], sizes = [1, 4], strides = [1, 1]} : vector<8x4xf32> to vector<1x4xf32>
    %cst_10 = arith.constant dense<0.000000e+00> : vector<1x4xf32>
    %17 = tpu.matmul %15, %6, %cst_10 {dimension_numbers = #tpu.dot_dimension_numbers<[1], [0], [0], [1], [0, 0, 1, 1], [], []>} : vector<1x4xf32>, vector<4x4xf32>, vector<1x4xf32> -> vector<1x4xf32>
    %18 = arith.addf %16, %17 : vector<1x4xf32>
    %19 = math.tanh %18 : vector<1x4xf32>
    %20 = vector.extract_strided_slice %5 {offsets = [3, 0], sizes = [1, 4], strides = [1, 1]} : vector<8x4xf32> to vector<1x4xf32>
    %cst_11 = arith.constant dense<0.000000e+00> : vector<1x4xf32>
    %21 = tpu.matmul %19, %6, %cst_11 {dimension_numbers = #tpu.dot_dimension_numbers<[1], [0], [0], [1], [0, 0, 1, 1], [], []>} : vector<1x4xf32>, vector<4x4xf32>, vector<1x4xf32> -> vector<1x4xf32>
    %22 = arith.addf %20, %21 : vector<1x4xf32>
    %23 = math.tanh %22 : vector<1x4xf32>
    %24 = vector.extract_strided_slice %5 {offsets = [4, 0], sizes = [1, 4], strides = [1, 1]} : vector<8x4xf32> to vector<1x4xf32>
    %cst_12 = arith.constant dense<0.000000e+00> : vector<1x4xf32>
    %25 = tpu.matmul %23, %6, %cst_12 {dimension_numbers = #tpu.dot_dimension_numbers<[1], [0], [0], [1], [0, 0, 1, 1], [], []>} : vector<1x4xf32>, vector<4x4xf32>, vector<1x4xf32> -> vector<1x4xf32>
    %26 = arith.addf %24, %25 : vector<1x4xf32>
    %27 = math.tanh %26 : vector<1x4xf32>
    %28 = vector.extract_strided_slice %5 {offsets = [5, 0], sizes = [1, 4], strides = [1, 1]} : vector<8x4xf32> to vector<1x4xf32>
    %cst_13 = arith.constant dense<0.000000e+00> : vector<1x4xf32>
    %29 = tpu.matmul %27, %6, %cst_13 {dimension_numbers = #tpu.dot_dimension_numbers<[1], [0], [0], [1], [0, 0, 1, 1], [], []>} : vector<1x4xf32>, vector<4x4xf32>, vector<1x4xf32> -> vector<1x4xf32>
    %30 = arith.addf %28, %29 : vector<1x4xf32>
    %31 = math.tanh %30 : vector<1x4xf32>
    %32 = vector.extract_strided_slice %5 {offsets = [6, 0], sizes = [1, 4], strides = [1, 1]} : vector<8x4xf32> to vector<1x4xf32>
    %cst_14 = arith.constant dense<0.000000e+00> : vector<1x4xf32>
    %33 = tpu.matmul %31, %6, %cst_14 {dimension_numbers = #tpu.dot_dimension_numbers<[1], [0], [0], [1], [0, 0, 1, 1], [], []>} : vector<1x4xf32>, vector<4x4xf32>, vector<1x4xf32> -> vector<1x4xf32>
    %34 = arith.addf %32, %33 : vector<1x4xf32>
    %35 = math.tanh %34 : vector<1x4xf32>
    %36 = vector.extract_strided_slice %5 {offsets = [7, 0], sizes = [1, 4], strides = [1, 1]} : vector<8x4xf32> to vector<1x4xf32>
    %cst_15 = arith.constant dense<0.000000e+00> : vector<1x4xf32>
    %37 = tpu.matmul %35, %6, %cst_15 {dimension_numbers = #tpu.dot_dimension_numbers<[1], [0], [0], [1], [0, 0, 1, 1], [], []>} : vector<1x4xf32>, vector<4x4xf32>, vector<1x4xf32> -> vector<1x4xf32>
    %38 = arith.addf %36, %37 : vector<1x4xf32>
    %39 = math.tanh %38 : vector<1x4xf32>
    %40 = tpu.concatenate %11, %15, %19, %23, %27, %31, %35, %39 in 0 : vector<1x4xf32>, vector<1x4xf32>, vector<1x4xf32>, vector<1x4xf32>, vector<1x4xf32>, vector<1x4xf32>, vector<1x4xf32>, vector<1x4xf32> -> vector<8x4xf32>
    %c0_16 = arith.constant 0 : index
    %c0_17 = arith.constant 0 : index
    %41 = vector.load %arg4[%c0_16, %c0_17] : memref<8x4xf32, #tpu.memory_space<vmem>>, vector<8x4xf32>
    tpu.vector_store %arg4[%c0_16, %c0_17], %40 {strides = array<i32>} : memref<8x4xf32, #tpu.memory_space<vmem>>, vector<8x4xf32>,
    return
  }
}

</mosaic_0001>

<llo_original>
// kernel: rnn_forward.1
$region0: #{rnn_forward.1}
  #allocation0 [shape = 'u32[]', space=smem, size = 0x4, offset = 0x4, fixed_abs, tag = 'smem constant byte address 0x4 - core index']
  #allocation1 [shape = 'u32[144,128]{1,0:T(1,128)}', space=vmem, size = 0x12000, scoped, tag = 'internal scratch']
  %s0 = inlined_call_operand.vmem [shape: f32[8,4], index: 0, kind: input, shape index: {}]
  %s1 = inlined_call_operand.vmem [shape: f32[4,4], index: 1, kind: input, shape index: {}]
  %s2 = inlined_call_operand.vmem [shape: f32[4,4], index: 2, kind: input, shape index: {}]
  %s3 = inlined_call_operand.vmem [shape: f32[1,4], index: 3, kind: input, shape index: {}]
  %s4 = inlined_call_operand.vmem [shape: f32[8,4], index: 4, kind: output, shape index: {}]
  %s5 = sld [smem:[#allocation0]]
  $region26: #{rnn_forward.1} parent=0
    _
  %s7 = ssub.s32 1, %s5
  %s8 = scalar_select 0, %s7, %s5
  // Predicated region
  $region2: #{rnn_forward.1} parent=0 // pred_check
    _
  $region3: #{rnn_forward.1} parent=0 // pred_check_branch
    %10 = sbr.rel (0) target = $region5
  $region4: #{rnn_forward.1} parent=0 // pred_region
    _
  $region5: #{rnn_forward.1} parent=0 // pred_fallthru
    _
  // Predicated region
  $region6: #{rnn_forward.1} parent=0 // pred_check
    _
  $region7: #{rnn_forward.1} parent=0 // pred_check_branch
    %12 = sbr.rel (0) target = $region9
  $region8: #{rnn_forward.1} parent=0 // pred_region
    _
  $region9: #{rnn_forward.1} parent=0 // pred_fallthru
    _
  // Predicated region
  $region10: #{rnn_forward.1} parent=0 // pred_check
    _
  $region11: #{rnn_forward.1} parent=0 // pred_check_branch
    %14 = sbr.rel (0) target = $region13
  $region12: #{rnn_forward.1} parent=0 // pred_region
    _
  $region13: #{rnn_forward.1} parent=0 // pred_fallthru
    _
  // Predicated region
  $region14: #{rnn_forward.1} parent=0 // pred_check
    _
  $region15: #{rnn_forward.1} parent=0 // pred_check_branch
    %16 = sbr.rel (0) target = $region17
  $region16: #{rnn_forward.1} parent=0 // pred_region
    _
  $region17: #{rnn_forward.1} parent=0 // pred_fallthru
    _
  %v17 = vld [vmem:[%s0] sm:$0xff]
  %v18 = vld [vmem:[%s1] sm:$0xf]
  %v19 = vld [vmem:[%s3] sm:$0x1]
  %v21 = vlaneseq
  %v22 = vshrl.u32 %v21, 7
  %v23 = vsub.s32 0, %v22
  %v24 = vrot.slane %v19, %v23
  %vm26 = vcmask 31744
  %v28 = vsel %vm26, %v17, 0
  %v31 = vsel %vm26, %v18, 0
  %33 = vmatprep.subr.mxu0 0.0
  %34 = vmatpush1.xpose.msra.mxu0 0.0
  %35 = vmatprep.subr.mxu0 0.0
  %36 = vmatpush1.xpose.msra.mxu0 0.0
  %37 = vmatprep.subr.mxu0 0.0
  %38 = vmatpush1.xpose.msra.mxu0 0.0
  %39 = vmatprep.subr.mxu0 0.0
  %40 = vmatpush1.xpose.msra.mxu0 0.0
  %41 = vmatprep.subr.mxu0 0.0
  %42 = vmatpush1.xpose.msra.mxu0 0.0
  %43 = vmatprep.subr.mxu0 0.0
  %44 = vmatpush1.xpose.msra.mxu0 0.0
  %45 = vmatprep.subr.mxu0 0.0
  %46 = vmatpush1.xpose.msra.mxu0 0.0
  %47 = vmatprep.subr.mxu0 0.0
  %48 = vmatpush1.xpose.msra.mxu0 0.0
  %49 = vmatprep.subr.mxu0 0.0
  %50 = vmatpush1.xpose.msra.mxu0 0.0
  %51 = vmatprep.subr.mxu0 0.0
  %52 = vmatpush1.xpose.msra.mxu0 0.0
  %53 = vmatprep.subr.mxu0 0.0
  %54 = vmatpush1.xpose.msra.mxu0 0.0
  %55 = vmatprep.subr.mxu0 0.0
  %56 = vmatpush1.xpose.msra.mxu0 0.0
  %57 = vmatprep.subr.mxu0 0.0
  %58 = vmatpush1.xpose.msra.mxu0 0.0
  %59 = vmatprep.subr.mxu0 0.0
  %60 = vmatpush1.xpose.msra.mxu0 0.0
  %61 = vmatprep.subr.mxu0 0.0
  %62 = vmatpush1.xpose.msra.mxu0 0.0
  %63 = vmatprep.subr.mxu0 0.0
  %64 = vmatpush1.xpose.msra.mxu0 %v31
  %65 = vmatprep.subr.mxu0 0.0
  %66 = vmatpush2.xpose.msra.mxu0 0.0
  %67 = vmatprep.subr.mxu0 0.0
  %68 = vmatpush2.xpose.msra.mxu0 0.0
  %69 = vmatprep.subr.mxu0 0.0
  %70 = vmatpush2.xpose.msra.mxu0 0.0
  %71 = vmatprep.subr.mxu0 0.0
  %72 = vmatpush2.xpose.msra.mxu0 0.0
  %73 = vmatprep.subr.mxu0 0.0
  %74 = vmatpush2.xpose.msra.mxu0 0.0
  %75 = vmatprep.subr.mxu0 0.0
  %76 = vmatpush2.xpose.msra.mxu0 0.0
  %77 = vmatprep.subr.mxu0 0.0
  %78 = vmatpush2.xpose.msra.mxu0 0.0
  %79 = vmatprep.subr.mxu0 0.0
  %80 = vmatpush2.xpose.msra.mxu0 0.0
  %81 = vmatprep.subr.mxu0 0.0
  %82 = vmatpush2.xpose.msra.mxu0 0.0
  %83 = vmatprep.subr.mxu0 0.0
  %84 = vmatpush2.xpose.msra.mxu0 0.0
  %85 = vmatprep.subr.mxu0 0.0
  %86 = vmatpush2.xpose.msra.mxu0 0.0
  %87 = vmatprep.subr.mxu0 0.0
  %88 = vmatpush2.xpose.msra.mxu0 0.0
  %89 = vmatprep.subr.mxu0 0.0
  %90 = vmatpush2.xpose.msra.mxu0 0.0
  %91 = vmatprep.subr.mxu0 0.0
  %92 = vmatpush2.xpose.msra.mxu0 0.0
  %93 = vmatprep.subr.mxu0 0.0
  %94 = vmatpush2.xpose.msra.mxu0 0.0
  %95 = vmatprep.subr.mxu0 0.0
  %96 = vmatpush2.xpose.msra.mxu0 0.0
  %97 = vmatprep.mubr.f32.mxu0 0.0
  %98 = vmatmul.mubr.f32.gmra.mxu0 %v28
  %v99 = vpop.f32.mrf.mxu0
  %v100 = vadd.f32 %v24, %v99
  %v101 = vpop.f32.mrf.mxu0
  %102 = vdwg.mxu0
  %v103 = vld [vmem:[%s2] sm:$0xf]
  %v105 = vsel %vm26, 0.0, 0
  %vm107 = vcmask 1043456
  %v109 = vsel %vm107, %v103, 0
  %111 = vmatprep.subr.mxu0 0.0
  %112 = vmatpush1.msra.mxu0 0.0
  %113 = vmatprep.subr.mxu0 0.0
  %114 = vmatpush1.msra.mxu0 0.0
  %115 = vmatprep.subr.mxu0 0.0
  %116 = vmatpush1.msra.mxu0 0.0
  %117 = vmatprep.subr.mxu0 0.0
  %118 = vmatpush1.msra.mxu0 0.0
  %119 = vmatprep.subr.mxu0 0.0
  %120 = vmatpush1.msra.mxu0 0.0
  %121 = vmatprep.subr.mxu0 0.0
  %122 = vmatpush1.msra.mxu0 0.0
  %123 = vmatprep.subr.mxu0 0.0
  %124 = vmatpush1.msra.mxu0 0.0
  %125 = vmatprep.subr.mxu0 0.0
  %126 = vmatpush1.msra.mxu0 0.0
  %127 = vmatprep.subr.mxu0 0.0
  %128 = vmatpush1.msra.mxu0 0.0
  %129 = vmatprep.subr.mxu0 0.0
  %130 = vmatpush1.msra.mxu0 0.0
  %131 = vmatprep.subr.mxu0 0.0
  %132 = vmatpush1.msra.mxu0 0.0
  %133 = vmatprep.subr.mxu0 0.0
  %134 = vmatpush1.msra.mxu0 0.0
  %135 = vmatprep.subr.mxu0 0.0
  %136 = vmatpush1.msra.mxu0 0.0
  %137 = vmatprep.subr.mxu0 0.0
  %138 = vmatpush1.msra.mxu0 0.0
  %139 = vmatprep.subr.mxu0 0.0
  %140 = vmatpush1.msra.mxu0 0.0
  %141 = vmatprep.subr.mxu0 0.0
  %142 = vmatpush1.msra.mxu0 %v109
  %143 = vmatprep.subr.mxu0 0.0
  %144 = vmatpush2.msra.mxu0 0.0
  %145 = vmatprep.subr.mxu0 0.0
  %146 = vmatpush2.msra.mxu0 0.0
  %147 = vmatprep.subr.mxu0 0.0
  %148 = vmatpush2.msra.mxu0 0.0
  %149 = vmatprep.subr.mxu0 0.0
  %150 = vmatpush2.msra.mxu0 0.0
  %151 = vmatprep.subr.mxu0 0.0
  %152 = vmatpush2.msra.mxu0 0.0
  %153 = vmatprep.subr.mxu0 0.0
  %154 = vmatpush2.msra.mxu0 0.0
  %155 = vmatprep.subr.mxu0 0.0
  %156 = vmatpush2.msra.mxu0 0.0
  %157 = vmatprep.subr.mxu0 0.0
  %158 = vmatpush2.msra.mxu0 0.0
  %159 = vmatprep.subr.mxu0 0.0
  %160 = vmatpush2.msra.mxu0 0.0
  %161 = vmatprep.subr.mxu0 0.0
  %162 = vmatpush2.msra.mxu0 0.0
  %163 = vmatprep.subr.mxu0 0.0
  %164 = vmatpush2.msra.mxu0 0.0
  %165 = vmatprep.subr.mxu0 0.0
  %166 = vmatpush2.msra.mxu0 0.0
  %167 = vmatprep.subr.mxu0 0.0
  %168 = vmatpush2.msra.mxu0 0.0
  %169 = vmatprep.subr.mxu0 0.0
  %170 = vmatpush2.msra.mxu0 0.0
  %171 = vmatprep.subr.mxu0 0.0
  %172 = vmatpush2.msra.mxu0 0.0
  %173 = vmatprep.subr.mxu0 0.0
  %174 = vmatpush2.msra.mxu0 0.0
  %175 = vmatprep.mubr.f32.mxu0 0.0
  %176 = vmatmul.mubr.f32.gmra.mxu0 %v105
  %v177 = vpop.f32.mrf.mxu0
  %v178 = vadd.f32 0.0, %v177
  %v179 = vpop.f32.mrf.mxu0
  %180 = vdwg.mxu0
  %v181 = vadd.f32 %v100, %v178
  %v182 = vtanh.pop %v181
  %v184 = vsel %vm26, %v182, 0
  %186 = vmatprep.subr.mxu0 0.0
  %187 = vmatpush1.msra.mxu0 0.0
  %188 = vmatprep.subr.mxu0 0.0
  %189 = vmatpush1.msra.mxu0 0.0
  %190 = vmatprep.subr.mxu0 0.0
  %191 = vmatpush1.msra.mxu0 0.0
  %192 = vmatprep.subr.mxu0 0.0
  %193 = vmatpush1.msra.mxu0 0.0
  %194 = vmatprep.subr.mxu0 0.0
  %195 = vmatpush1.msra.mxu0 0.0
  %196 = vmatprep.subr.mxu0 0.0
  %197 = vmatpush1.msra.mxu0 0.0
  %198 = vmatprep.subr.mxu0 0.0
  %199 = vmatpush1.msra.mxu0 0.0
  %200 = vmatprep.subr.mxu0 0.0
  %201 = vmatpush1.msra.mxu0 0.0
  %202 = vmatprep.subr.mxu0 0.0
  %203 = vmatpush1.msra.mxu0 0.0
  %204 = vmatprep.subr.mxu0 0.0
  %205 = vmatpush1.msra.mxu0 0.0
  %206 = vmatprep.subr.mxu0 0.0
  %207 = vmatpush1.msra.mxu0 0.0
  %208 = vmatprep.subr.mxu0 0.0
  %209 = vmatpush1.msra.mxu0 0.0
  %210 = vmatprep.subr.mxu0 0.0
  %211 = vmatpush1.msra.mxu0 0.0
  %212 = vmatprep.subr.mxu0 0.0
  %213 = vmatpush1.msra.mxu0 0.0
  %214 = vmatprep.subr.mxu0 0.0
  %215 = vmatpush1.msra.mxu0 0.0
  %216 = vmatprep.subr.mxu0 0.0
  %217 = vmatpush1.msra.mxu0 %v109
  %218 = vmatprep.subr.mxu0 0.0
  %219 = vmatpush2.msra.mxu0 0.0
  %220 = vmatprep.subr.mxu0 0.0
  %221 = vmatpush2.msra.mxu0 0.0
  %222 = vmatprep.subr.mxu0 0.0
  %223 = vmatpush2.msra.mxu0 0.0
  %224 = vmatprep.subr.mxu0 0.0
  %225 = vmatpush2.msra.mxu0 0.0
  %226 = vmatprep.subr.mxu0 0.0
  %227 = vmatpush2.msra.mxu0 0.0
  %228 = vmatprep.subr.mxu0 0.0
  %229 = vmatpush2.msra.mxu0 0.0
  %230 = vmatprep.subr.mxu0 0.0
  %231 = vmatpush2.msra.mxu0 0.0
  %232 = vmatprep.subr.mxu0 0.0
  %233 = vmatpush2.msra.mxu0 0.0
  %234 = vmatprep.subr.mxu0 0.0
  %235 = vmatpush2.msra.mxu0 0.0
  %236 = vmatprep.subr.mxu0 0.0
  %237 = vmatpush2.msra.mxu0 0.0
  %238 = vmatprep.subr.mxu0 0.0
  %239 = vmatpush2.msra.mxu0 0.0
  %240 = vmatprep.subr.mxu0 0.0
  %241 = vmatpush2.msra.mxu0 0.0
  %242 = vmatprep.subr.mxu0 0.0
  %243 = vmatpush2.msra.mxu0 0.0
  %244 = vmatprep.subr.mxu0 0.0
  %245 = vmatpush2.msra.mxu0 0.0
  %246 = vmatprep.subr.mxu0 0.0
  %247 = vmatpush2.msra.mxu0 0.0
  %248 = vmatprep.subr.mxu0 0.0
  %249 = vmatpush2.msra.mxu0 0.0
  %250 = vmatprep.mubr.f32.mxu0 0.0
  %251 = vmatmul.mubr.f32.gmra.mxu0 %v184
  %v252 = vpop.f32.mrf.mxu0
  %v253 = vadd.f32 0.0, %v252
  %v254 = vpop.f32.mrf.mxu0
  %255 = vdwg.mxu0
  %v257 = vrot.slane %v253, 7
  %v259 = vadd.f32 %v100, %v257
  %v260 = vtanh.pop %v259
  %v262 = vrot.slane %v260, 1
  %v263 = vsel %vm26, %v262, 0
  %265 = vmatprep.subr.mxu0 0.0
  %266 = vmatpush1.msra.mxu0 0.0
  %267 = vmatprep.subr.mxu0 0.0
  %268 = vmatpush1.msra.mxu0 0.0
  %269 = vmatprep.subr.mxu0 0.0
  %270 = vmatpush1.msra.mxu0 0.0
  %271 = vmatprep.subr.mxu0 0.0
  %272 = vmatpush1.msra.mxu0 0.0
  %273 = vmatprep.subr.mxu0 0.0
  %274 = vmatpush1.msra.mxu0 0.0
  %275 = vmatprep.subr.mxu0 0.0
  %276 = vmatpush1.msra.mxu0 0.0
  %277 = vmatprep.subr.mxu0 0.0
  %278 = vmatpush1.msra.mxu0 0.0
  %279 = vmatprep.subr.mxu0 0.0
  %280 = vmatpush1.msra.mxu0 0.0
  %281 = vmatprep.subr.mxu0 0.0
  %282 = vmatpush1.msra.mxu0 0.0
  %283 = vmatprep.subr.mxu0 0.0
  %284 = vmatpush1.msra.mxu0 0.0
  %285 = vmatprep.subr.mxu0 0.0
  %286 = vmatpush1.msra.mxu0 0.0
  %287 = vmatprep.subr.mxu0 0.0
  %288 = vmatpush1.msra.mxu0 0.0
  %289 = vmatprep.subr.mxu0 0.0
  %290 = vmatpush1.msra.mxu0 0.0
  %291 = vmatprep.subr.mxu0 0.0
  %292 = vmatpush1.msra.mxu0 0.0
  %293 = vmatprep.subr.mxu0 0.0
  %294 = vmatpush1.msra.mxu0 0.0
  %295 = vmatprep.subr.mxu0 0.0
  %296 = vmatpush1.msra.mxu0 %v109
  %297 = vmatprep.subr.mxu0 0.0
  %298 = vmatpush2.msra.mxu0 0.0
  %299 = vmatprep.subr.mxu0 0.0
  %300 = vmatpush2.msra.mxu0 0.0
  %301 = vmatprep.subr.mxu0 0.0
  %302 = vmatpush2.msra.mxu0 0.0
  %303 = vmatprep.subr.mxu0 0.0
  %304 = vmatpush2.msra.mxu0 0.0
  %305 = vmatprep.subr.mxu0 0.0
  %306 = vmatpush2.msra.mxu0 0.0
  %307 = vmatprep.subr.mxu0 0.0
  %308 = vmatpush2.msra.mxu0 0.0
  %309 = vmatprep.subr.mxu0 0.0
  %310 = vmatpush2.msra.mxu0 0.0
  %311 = vmatprep.subr.mxu0 0.0
  %312 = vmatpush2.msra.mxu0 0.0
  %313 = vmatprep.subr.mxu0 0.0
  %314 = vmatpush2.msra.mxu0 0.0
  %315 = vmatprep.subr.mxu0 0.0
  %316 = vmatpush2.msra.mxu0 0.0
  %317 = vmatprep.subr.mxu0 0.0
  %318 = vmatpush2.msra.mxu0 0.0
  %319 = vmatprep.subr.mxu0 0.0
  %320 = vmatpush2.msra.mxu0 0.0
  %321 = vmatprep.subr.mxu0 0.0
  %322 = vmatpush2.msra.mxu0 0.0
  %323 = vmatprep.subr.mxu0 0.0
  %324 = vmatpush2.msra.mxu0 0.0
  %325 = vmatprep.subr.mxu0 0.0
  %326 = vmatpush2.msra.mxu0 0.0
  %327 = vmatprep.subr.mxu0 0.0
  %328 = vmatpush2.msra.mxu0 0.0
  %329 = vmatprep.mubr.f32.mxu0 0.0
  %330 = vmatmul.mubr.f32.gmra.mxu0 %v263
  %v331 = vpop.f32.mrf.mxu0
  %v332 = vadd.f32 0.0, %v331
  %v333 = vpop.f32.mrf.mxu0
  %334 = vdwg.mxu0
  %v336 = vrot.slane %v332, 6
  %v338 = vadd.f32 %v100, %v336
  %v339 = vtanh.pop %v338
  %v341 = vrot.slane %v339, 2
  %v342 = vsel %vm26, %v341, 0
  %344 = vmatprep.subr.mxu0 0.0
  %345 = vmatpush1.msra.mxu0 0.0
  %346 = vmatprep.subr.mxu0 0.0
  %347 = vmatpush1.msra.mxu0 0.0
  %348 = vmatprep.subr.mxu0 0.0
  %349 = vmatpush1.msra.mxu0 0.0
  %350 = vmatprep.subr.mxu0 0.0
  %351 = vmatpush1.msra.mxu0 0.0
  %352 = vmatprep.subr.mxu0 0.0
  %353 = vmatpush1.msra.mxu0 0.0
  %354 = vmatprep.subr.mxu0 0.0
  %355 = vmatpush1.msra.mxu0 0.0
  %356 = vmatprep.subr.mxu0 0.0
  %357 = vmatpush1.msra.mxu0 0.0
  %358 = vmatprep.subr.mxu0 0.0
  %359 = vmatpush1.msra.mxu0 0.0
  %360 = vmatprep.subr.mxu0 0.0
  %361 = vmatpush1.msra.mxu0 0.0
  %362 = vmatprep.subr.mxu0 0.0
  %363 = vmatpush1.msra.mxu0 0.0
  %364 = vmatprep.subr.mxu0 0.0
  %365 = vmatpush1.msra.mxu0 0.0
  %366 = vmatprep.subr.mxu0 0.0
  %367 = vmatpush1.msra.mxu0 0.0
  %368 = vmatprep.subr.mxu0 0.0
  %369 = vmatpush1.msra.mxu0 0.0
  %370 = vmatprep.subr.mxu0 0.0
  %371 = vmatpush1.msra.mxu0 0.0
  %372 = vmatprep.subr.mxu0 0.0
  %373 = vmatpush1.msra.mxu0 0.0
  %374 = vmatprep.subr.mxu0 0.0
  %375 = vmatpush1.msra.mxu0 %v109
  %376 = vmatprep.subr.mxu0 0.0
  %377 = vmatpush2.msra.mxu0 0.0
  %378 = vmatprep.subr.mxu0 0.0
  %379 = vmatpush2.msra.mxu0 0.0
  %380 = vmatprep.subr.mxu0 0.0
  %381 = vmatpush2.msra.mxu0 0.0
  %382 = vmatprep.subr.mxu0 0.0
  %383 = vmatpush2.msra.mxu0 0.0
  %384 = vmatprep.subr.mxu0 0.0
  %385 = vmatpush2.msra.mxu0 0.0
  %386 = vmatprep.subr.mxu0 0.0
  %387 = vmatpush2.msra.mxu0 0.0
  %388 = vmatprep.subr.mxu0 0.0
  %389 = vmatpush2.msra.mxu0 0.0
  %390 = vmatprep.subr.mxu0 0.0
  %391 = vmatpush2.msra.mxu0 0.0
  %392 = vmatprep.subr.mxu0 0.0
  %393 = vmatpush2.msra.mxu0 0.0
  %394 = vmatprep.subr.mxu0 0.0
  %395 = vmatpush2.msra.mxu0 0.0
  %396 = vmatprep.subr.mxu0 0.0
  %397 = vmatpush2.msra.mxu0 0.0
  %398 = vmatprep.subr.mxu0 0.0
  %399 = vmatpush2.msra.mxu0 0.0
  %400 = vmatprep.subr.mxu0 0.0
  %401 = vmatpush2.msra.mxu0 0.0
  %402 = vmatprep.subr.mxu0 0.0
  %403 = vmatpush2.msra.mxu0 0.0
  %404 = vmatprep.subr.mxu0 0.0
  %405 = vmatpush2.msra.mxu0 0.0
  %406 = vmatprep.subr.mxu0 0.0
  %407 = vmatpush2.msra.mxu0 0.0
  %408 = vmatprep.mubr.f32.mxu0 0.0
  %409 = vmatmul.mubr.f32.gmra.mxu0 %v342
  %v410 = vpop.f32.mrf.mxu0
  %v411 = vadd.f32 0.0, %v410
  %v412 = vpop.f32.mrf.mxu0
  %413 = vdwg.mxu0
  %v415 = vrot.slane %v411, 5
  %v417 = vadd.f32 %v100, %v415
  %v418 = vtanh.pop %v417
  %v420 = vrot.slane %v418, 3
  %v421 = vsel %vm26, %v420, 0
  %423 = vmatprep.subr.mxu0 0.0
  %424 = vmatpush1.msra.mxu0 0.0
  %425 = vmatprep.subr.mxu0 0.0
  %426 = vmatpush1.msra.mxu0 0.0
  %427 = vmatprep.subr.mxu0 0.0
  %428 = vmatpush1.msra.mxu0 0.0
  %429 = vmatprep.subr.mxu0 0.0
  %430 = vmatpush1.msra.mxu0 0.0
  %431 = vmatprep.subr.mxu0 0.0
  %432 = vmatpush1.msra.mxu0 0.0
  %433 = vmatprep.subr.mxu0 0.0
  %434 = vmatpush1.msra.mxu0 0.0
  %435 = vmatprep.subr.mxu0 0.0
  %436 = vmatpush1.msra.mxu0 0.0
  %437 = vmatprep.subr.mxu0 0.0
  %438 = vmatpush1.msra.mxu0 0.0
  %439 = vmatprep.subr.mxu0 0.0
  %440 = vmatpush1.msra.mxu0 0.0
  %441 = vmatprep.subr.mxu0 0.0
  %442 = vmatpush1.msra.mxu0 0.0
  %443 = vmatprep.subr.mxu0 0.0
  %444 = vmatpush1.msra.mxu0 0.0
  %445 = vmatprep.subr.mxu0 0.0
  %446 = vmatpush1.msra.mxu0 0.0
  %447 = vmatprep.subr.mxu0 0.0
  %448 = vmatpush1.msra.mxu0 0.0
  %449 = vmatprep.subr.mxu0 0.0
  %450 = vmatpush1.msra.mxu0 0.0
  %451 = vmatprep.subr.mxu0 0.0
  %452 = vmatpush1.msra.mxu0 0.0
  %453 = vmatprep.subr.mxu0 0.0
  %454 = vmatpush1.msra.mxu0 %v109
  %455 = vmatprep.subr.mxu0 0.0
  %456 = vmatpush2.msra.mxu0 0.0
  %457 = vmatprep.subr.mxu0 0.0
  %458 = vmatpush2.msra.mxu0 0.0
  %459 = vmatprep.subr.mxu0 0.0
  %460 = vmatpush2.msra.mxu0 0.0
  %461 = vmatprep.subr.mxu0 0.0
  %462 = vmatpush2.msra.mxu0 0.0
  %463 = vmatprep.subr.mxu0 0.0
  %464 = vmatpush2.msra.mxu0 0.0
  %465 = vmatprep.subr.mxu0 0.0
  %466 = vmatpush2.msra.mxu0 0.0
  %467 = vmatprep.subr.mxu0 0.0
  %468 = vmatpush2.msra.mxu0 0.0
  %469 = vmatprep.subr.mxu0 0.0
  %470 = vmatpush2.msra.mxu0 0.0
  %471 = vmatprep.subr.mxu0 0.0
  %472 = vmatpush2.msra.mxu0 0.0
  %473 = vmatprep.subr.mxu0 0.0
  %474 = vmatpush2.msra.mxu0 0.0
  %475 = vmatprep.subr.mxu0 0.0
  %476 = vmatpush2.msra.mxu0 0.0
  %477 = vmatprep.subr.mxu0 0.0
  %478 = vmatpush2.msra.mxu0 0.0
  %479 = vmatprep.subr.mxu0 0.0
  %480 = vmatpush2.msra.mxu0 0.0
  %481 = vmatprep.subr.mxu0 0.0
  %482 = vmatpush2.msra.mxu0 0.0
  %483 = vmatprep.subr.mxu0 0.0
  %484 = vmatpush2.msra.mxu0 0.0
  %485 = vmatprep.subr.mxu0 0.0
  %486 = vmatpush2.msra.mxu0 0.0
  %487 = vmatprep.mubr.f32.mxu0 0.0
  %488 = vmatmul.mubr.f32.gmra.mxu0 %v421
  %v489 = vpop.f32.mrf.mxu0
  %v490 = vadd.f32 0.0, %v489
  %v491 = vpop.f32.mrf.mxu0
  %492 = vdwg.mxu0
  %v494 = vrot.slane %v490, 4
  %v496 = vadd.f32 %v100, %v494
  %v497 = vtanh.pop %v496
  %v499 = vrot.slane %v497, 4
  %v500 = vsel %vm26, %v499, 0
  %502 = vmatprep.subr.mxu0 0.0
  %503 = vmatpush1.msra.mxu0 0.0
  %504 = vmatprep.subr.mxu0 0.0
  %505 = vmatpush1.msra.mxu0 0.0
  %506 = vmatprep.subr.mxu0 0.0
  %507 = vmatpush1.msra.mxu0 0.0
  %508 = vmatprep.subr.mxu0 0.0
  %509 = vmatpush1.msra.mxu0 0.0
  %510 = vmatprep.subr.mxu0 0.0
  %511 = vmatpush1.msra.mxu0 0.0
  %512 = vmatprep.subr.mxu0 0.0
  %513 = vmatpush1.msra.mxu0 0.0
  %514 = vmatprep.subr.mxu0 0.0
  %515 = vmatpush1.msra.mxu0 0.0
  %516 = vmatprep.subr.mxu0 0.0
  %517 = vmatpush1.msra.mxu0 0.0
  %518 = vmatprep.subr.mxu0 0.0
  %519 = vmatpush1.msra.mxu0 0.0
  %520 = vmatprep.subr.mxu0 0.0
  %521 = vmatpush1.msra.mxu0 0.0
  %522 = vmatprep.subr.mxu0 0.0
  %523 = vmatpush1.msra.mxu0 0.0
  %524 = vmatprep.subr.mxu0 0.0
  %525 = vmatpush1.msra.mxu0 0.0
  %526 = vmatprep.subr.mxu0 0.0
  %527 = vmatpush1.msra.mxu0 0.0
  %528 = vmatprep.subr.mxu0 0.0
  %529 = vmatpush1.msra.mxu0 0.0
  %530 = vmatprep.subr.mxu0 0.0
  %531 = vmatpush1.msra.mxu0 0.0
  %532 = vmatprep.subr.mxu0 0.0
  %533 = vmatpush1.msra.mxu0 %v109
  %534 = vmatprep.subr.mxu0 0.0
  %535 = vmatpush2.msra.mxu0 0.0
  %536 = vmatprep.subr.mxu0 0.0
  %537 = vmatpush2.msra.mxu0 0.0
  %538 = vmatprep.subr.mxu0 0.0
  %539 = vmatpush2.msra.mxu0 0.0
  %540 = vmatprep.subr.mxu0 0.0
  %541 = vmatpush2.msra.mxu0 0.0
  %542 = vmatprep.subr.mxu0 0.0
  %543 = vmatpush2.msra.mxu0 0.0
  %544 = vmatprep.subr.mxu0 0.0
  %545 = vmatpush2.msra.mxu0 0.0
  %546 = vmatprep.subr.mxu0 0.0
  %547 = vmatpush2.msra.mxu0 0.0
  %548 = vmatprep.subr.mxu0 0.0
  %549 = vmatpush2.msra.mxu0 0.0
  %550 = vmatprep.subr.mxu0 0.0
  %551 = vmatpush2.msra.mxu0 0.0
  %552 = vmatprep.subr.mxu0 0.0
  %553 = vmatpush2.msra.mxu0 0.0
  %554 = vmatprep.subr.mxu0 0.0
  %555 = vmatpush2.msra.mxu0 0.0
  %556 = vmatprep.subr.mxu0 0.0
  %557 = vmatpush2.msra.mxu0 0.0
  %558 = vmatprep.subr.mxu0 0.0
  %559 = vmatpush2.msra.mxu0 0.0
  %560 = vmatprep.subr.mxu0 0.0
  %561 = vmatpush2.msra.mxu0 0.0
  %562 = vmatprep.subr.mxu0 0.0
  %563 = vmatpush2.msra.mxu0 0.0
  %564 = vmatprep.subr.mxu0 0.0
  %565 = vmatpush2.msra.mxu0 0.0
  %566 = vmatprep.mubr.f32.mxu0 0.0
  %567 = vmatmul.mubr.f32.gmra.mxu0 %v500
  %v568 = vpop.f32.mrf.mxu0
  %v569 = vadd.f32 0.0, %v568
  %v570 = vpop.f32.mrf.mxu0
  %571 = vdwg.mxu0
  %v573 = vrot.slane %v569, 3
  %v575 = vadd.f32 %v100, %v573
  %v576 = vtanh.pop %v575
  %v578 = vrot.slane %v576, 5
  %v579 = vsel %vm26, %v578, 0
  %581 = vmatprep.subr.mxu0 0.0
  %582 = vmatpush1.msra.mxu0 0.0
  %583 = vmatprep.subr.mxu0 0.0
  %584 = vmatpush1.msra.mxu0 0.0
  %585 = vmatprep.subr.mxu0 0.0
  %586 = vmatpush1.msra.mxu0 0.0
  %587 = vmatprep.subr.mxu0 0.0
  %588 = vmatpush1.msra.mxu0 0.0
  %589 = vmatprep.subr.mxu0 0.0
  %590 = vmatpush1.msra.mxu0 0.0
  %591 = vmatprep.subr.mxu0 0.0
  %592 = vmatpush1.msra.mxu0 0.0
  %593 = vmatprep.subr.mxu0 0.0
  %594 = vmatpush1.msra.mxu0 0.0
  %595 = vmatprep.subr.mxu0 0.0
  %596 = vmatpush1.msra.mxu0 0.0
  %597 = vmatprep.subr.mxu0 0.0
  %598 = vmatpush1.msra.mxu0 0.0
  %599 = vmatprep.subr.mxu0 0.0
  %600 = vmatpush1.msra.mxu0 0.0
  %601 = vmatprep.subr.mxu0 0.0
  %602 = vmatpush1.msra.mxu0 0.0
  %603 = vmatprep.subr.mxu0 0.0
  %604 = vmatpush1.msra.mxu0 0.0
  %605 = vmatprep.subr.mxu0 0.0
  %606 = vmatpush1.msra.mxu0 0.0
  %607 = vmatprep.subr.mxu0 0.0
  %608 = vmatpush1.msra.mxu0 0.0
  %609 = vmatprep.subr.mxu0 0.0
  %610 = vmatpush1.msra.mxu0 0.0
  %611 = vmatprep.subr.mxu0 0.0
  %612 = vmatpush1.msra.mxu0 %v109
  %613 = vmatprep.subr.mxu0 0.0
  %614 = vmatpush2.msra.mxu0 0.0
  %615 = vmatprep.subr.mxu0 0.0
  %616 = vmatpush2.msra.mxu0 0.0
  %617 = vmatprep.subr.mxu0 0.0
  %618 = vmatpush2.msra.mxu0 0.0
  %619 = vmatprep.subr.mxu0 0.0
  %620 = vmatpush2.msra.mxu0 0.0
  %621 = vmatprep.subr.mxu0 0.0
  %622 = vmatpush2.msra.mxu0 0.0
  %623 = vmatprep.subr.mxu0 0.0
  %624 = vmatpush2.msra.mxu0 0.0
  %625 = vmatprep.subr.mxu0 0.0
  %626 = vmatpush2.msra.mxu0 0.0
  %627 = vmatprep.subr.mxu0 0.0
  %628 = vmatpush2.msra.mxu0 0.0
  %629 = vmatprep.subr.mxu0 0.0
  %630 = vmatpush2.msra.mxu0 0.0
  %631 = vmatprep.subr.mxu0 0.0
  %632 = vmatpush2.msra.mxu0 0.0
  %633 = vmatprep.subr.mxu0 0.0
  %634 = vmatpush2.msra.mxu0 0.0
  %635 = vmatprep.subr.mxu0 0.0
  %636 = vmatpush2.msra.mxu0 0.0
  %637 = vmatprep.subr.mxu0 0.0
  %638 = vmatpush2.msra.mxu0 0.0
  %639 = vmatprep.subr.mxu0 0.0
  %640 = vmatpush2.msra.mxu0 0.0
  %641 = vmatprep.subr.mxu0 0.0
  %642 = vmatpush2.msra.mxu0 0.0
  %643 = vmatprep.subr.mxu0 0.0
  %644 = vmatpush2.msra.mxu0 0.0
  %645 = vmatprep.mubr.f32.mxu0 0.0
  %646 = vmatmul.mubr.f32.gmra.mxu0 %v579
  %v647 = vpop.f32.mrf.mxu0
  %v648 = vadd.f32 0.0, %v647
  %v649 = vpop.f32.mrf.mxu0
  %650 = vdwg.mxu0
  %v652 = vrot.slane %v648, 2
  %v654 = vadd.f32 %v100, %v652
  %v655 = vtanh.pop %v654
  %v657 = vrot.slane %v655, 6
  %v658 = vsel %vm26, %v657, 0
  %660 = vmatprep.subr.mxu0 0.0
  %661 = vmatpush1.msra.mxu0 0.0
  %662 = vmatprep.subr.mxu0 0.0
  %663 = vmatpush1.msra.mxu0 0.0
  %664 = vmatprep.subr.mxu0 0.0
  %665 = vmatpush1.msra.mxu0 0.0
  %666 = vmatprep.subr.mxu0 0.0
  %667 = vmatpush1.msra.mxu0 0.0
  %668 = vmatprep.subr.mxu0 0.0
  %669 = vmatpush1.msra.mxu0 0.0
  %670 = vmatprep.subr.mxu0 0.0
  %671 = vmatpush1.msra.mxu0 0.0
  %672 = vmatprep.subr.mxu0 0.0
  %673 = vmatpush1.msra.mxu0 0.0
  %674 = vmatprep.subr.mxu0 0.0
  %675 = vmatpush1.msra.mxu0 0.0
  %676 = vmatprep.subr.mxu0 0.0
  %677 = vmatpush1.msra.mxu0 0.0
  %678 = vmatprep.subr.mxu0 0.0
  %679 = vmatpush1.msra.mxu0 0.0
  %680 = vmatprep.subr.mxu0 0.0
  %681 = vmatpush1.msra.mxu0 0.0
  %682 = vmatprep.subr.mxu0 0.0
  %683 = vmatpush1.msra.mxu0 0.0
  %684 = vmatprep.subr.mxu0 0.0
  %685 = vmatpush1.msra.mxu0 0.0
  %686 = vmatprep.subr.mxu0 0.0
  %687 = vmatpush1.msra.mxu0 0.0
  %688 = vmatprep.subr.mxu0 0.0
  %689 = vmatpush1.msra.mxu0 0.0
  %690 = vmatprep.subr.mxu0 0.0
  %691 = vmatpush1.msra.mxu0 %v109
  %692 = vmatprep.subr.mxu0 0.0
  %693 = vmatpush2.msra.mxu0 0.0
  %694 = vmatprep.subr.mxu0 0.0
  %695 = vmatpush2.msra.mxu0 0.0
  %696 = vmatprep.subr.mxu0 0.0
  %697 = vmatpush2.msra.mxu0 0.0
  %698 = vmatprep.subr.mxu0 0.0
  %699 = vmatpush2.msra.mxu0 0.0
  %700 = vmatprep.subr.mxu0 0.0
  %701 = vmatpush2.msra.mxu0 0.0
  %702 = vmatprep.subr.mxu0 0.0
  %703 = vmatpush2.msra.mxu0 0.0
  %704 = vmatprep.subr.mxu0 0.0
  %705 = vmatpush2.msra.mxu0 0.0
  %706 = vmatprep.subr.mxu0 0.0
  %707 = vmatpush2.msra.mxu0 0.0
  %708 = vmatprep.subr.mxu0 0.0
  %709 = vmatpush2.msra.mxu0 0.0
  %710 = vmatprep.subr.mxu0 0.0
  %711 = vmatpush2.msra.mxu0 0.0
  %712 = vmatprep.subr.mxu0 0.0
  %713 = vmatpush2.msra.mxu0 0.0
  %714 = vmatprep.subr.mxu0 0.0
  %715 = vmatpush2.msra.mxu0 0.0
  %716 = vmatprep.subr.mxu0 0.0
  %717 = vmatpush2.msra.mxu0 0.0
  %718 = vmatprep.subr.mxu0 0.0
  %719 = vmatpush2.msra.mxu0 0.0
  %720 = vmatprep.subr.mxu0 0.0
  %721 = vmatpush2.msra.mxu0 0.0
  %722 = vmatprep.subr.mxu0 0.0
  %723 = vmatpush2.msra.mxu0 0.0
  %724 = vmatprep.mubr.f32.mxu0 0.0
  %725 = vmatmul.mubr.f32.gmra.mxu0 %v658
  %v726 = vpop.f32.mrf.mxu0
  %v727 = vadd.f32 0.0, %v726
  %v728 = vpop.f32.mrf.mxu0
  %729 = vdwg.mxu0
  %v731 = vrot.slane %v727, 1
  %v733 = vadd.f32 %v100, %v731
  %v734 = vtanh.pop %v733
  %vm735 = vcmask 1040384
  %v736 = vsel %vm735, %v182, %v260
  %vm737 = vcmask 1041408
  %v738 = vsel %vm737, %v736, %v339
  %vm739 = vcmask 1042432
  %v740 = vsel %vm739, %v738, %v418
  %v741 = vsel %vm107, %v740, %v497
  %vm742 = vcmask 1044480
  %v743 = vsel %vm742, %v741, %v576
  %vm744 = vcmask 1045504
  %v745 = vsel %vm744, %v743, %v655
  %vm746 = vcmask 1046528
  %v747 = vsel %vm746, %v745, %v734
  %748 = vst.msk [vmem:[%s4] sm:$0xff] %vm26, %v747
  // Predicated region
  $region18: #{rnn_forward.1} parent=0 // pred_check
    _
  $region19: #{rnn_forward.1} parent=0 // pred_check_branch
    %750 = sbr.rel (0) target = $region21
  $region20: #{rnn_forward.1} parent=0 // pred_region
    _
  $region21: #{rnn_forward.1} parent=0 // pred_fallthru
    _
  // Predicated region
  $region22: #{rnn_forward.1} parent=0 // pred_check
    _
  $region23: #{rnn_forward.1} parent=0 // pred_check_branch
    %752 = sbr.rel (0) target = $region25
  $region24: #{rnn_forward.1} parent=0 // pred_region
    _
  $region25: #{rnn_forward.1} parent=0 // pred_fallthru
    _

</llo_original>
